<compile_context>
chip_gen: v7x
topology: tpu7x:2x2x1
jax: 0.10.0
libtpu: 0.0.40
codegen_flags: <defaults>
</compile_context>

<pallas_src>
import math
import functools

import numpy as np
import jax
import jax.numpy as jnp
from jax.experimental import pallas as pl
from jax.experimental.pallas import tpu as pltpu


# ------------------------------ TPU-generation config -----------------------

def _vmem_capacity_bytes():
    try:
        info = pltpu.get_tpu_info()
        return int(getattr(info, "vmem_capacity_bytes", 64 * 1024 * 1024))
    except Exception:
        return 64 * 1024 * 1024        # conservative (v7x-sized) fallback


_VMEM_CAP = _vmem_capacity_bytes()
_SMALL_VMEM = _VMEM_CAP <= 96 * 1024 * 1024          # v7x: 64 MiB / TC
_ROW_TILE_CAP = 512 if _SMALL_VMEM else 1024          # measured 85% / 86% of HBM roofline
_VMEM_LIMIT = (32 if _SMALL_VMEM else 64) * 1024 * 1024

_TILED_PARAMS = pltpu.CompilerParams(
    dimension_semantics=("parallel",), vmem_limit_bytes=_VMEM_LIMIT)
_SINGLE_PARAMS = pltpu.CompilerParams(vmem_limit_bytes=_VMEM_LIMIT)


def _pad_rows(x, cap):
    """Return (padded_x, row_tile, grid). Tile never exceeds cap; ragged tails are padded."""
    m = x.shape[0]
    if m <= cap:
        return x, m, 1
    tm = cap                                           # multiple of 8 by construction
    pm = ((m + tm - 1) // tm) * tm
    if pm != m:
        x = jnp.concatenate([x, jnp.zeros((pm - m,) + x.shape[1:], x.dtype)], axis=0)
    return x, tm, pm // tm


# ------------------- kernel 1: text projection + LayerNorm ------------------

def _proj_ln_kernel(x_ref, w_ref, b_ref, g_ref, bb_ref, o_ref, *, eps):
    y = jnp.dot(x_ref[...].astype(jnp.bfloat16), w_ref[...],
                preferred_element_type=jnp.float32) + b_ref[...]
    mu = jnp.mean(y, axis=-1, keepdims=True)
    var = jnp.mean((y - mu) ** 2, axis=-1, keepdims=True)
    o_ref[...] = (y - mu) * jax.lax.rsqrt(var + eps) * g_ref[...] + bb_ref[...]


def text_proj_layernorm(x, w, b, g, bb, eps=1e-5):
    m, k = x.shape
    n = w.shape[1]
    xp, tm, grid = _pad_rows(x, _ROW_TILE_CAP)
    out = pl.pallas_call(
        functools.partial(_proj_ln_kernel, eps=eps),
        grid=(grid,),
        in_specs=[
            pl.BlockSpec((tm, k), lambda i: (i, 0)),
            pl.BlockSpec((k, n), lambda i: (0, 0)),
            pl.BlockSpec((1, n), lambda i: (0, 0)),
            pl.BlockSpec((1, n), lambda i: (0, 0)),
            pl.BlockSpec((1, n), lambda i: (0, 0)),
        ],
        out_specs=pl.BlockSpec((tm, n), lambda i: (i, 0)),
        out_shape=jax.ShapeDtypeStruct((xp.shape[0], n), jnp.float32),
        compiler_params=_TILED_PARAMS,
    )(xp, w.astype(jnp.bfloat16), b.reshape(1, n), g.reshape(1, n), bb.reshape(1, n))
    return out[:m]


# ------------------------ kernel 2: 3 fused GCN layers ----------------------

def _gcn3_kernel(a_ref, x_ref, w1_ref, b1_ref, w2_ref, b2_ref, w3_ref, b3_ref, o_ref):
    a = a_ref[...]                                           # bf16 normalized adjacency
    h = jnp.dot(x_ref[...], w1_ref[...], preferred_element_type=jnp.float32)
    h = jnp.dot(a, h.astype(jnp.bfloat16), preferred_element_type=jnp.float32) + b1_ref[...]
    h = jnp.maximum(h, 0.0)
    h = jnp.dot(h.astype(jnp.bfloat16), w2_ref[...], preferred_element_type=jnp.float32)
    h = jnp.dot(a, h.astype(jnp.bfloat16), preferred_element_type=jnp.float32) + b2_ref[...]
    h = jnp.maximum(h, 0.0)
    h = jnp.dot(h.astype(jnp.bfloat16), w3_ref[...], preferred_element_type=jnp.float32)
    o_ref[...] = jnp.dot(a, h.astype(jnp.bfloat16),
                         preferred_element_type=jnp.float32) + b3_ref[...]


def gcn3(a_hat, x, p):
    n = x.shape[0]
    ghc = p["gcn3_w"].shape[1]
    # TODO(synk): tile over A_hat row blocks (rows 'parallel', K 'arbitrary' + VMEM accumulator)
    # for large N on v7x; the dense single-block form is only safe for small molecule graphs.
    return pl.pallas_call(
        _gcn3_kernel,
        out_shape=jax.ShapeDtypeStruct((n, ghc), jnp.float32),
        compiler_params=_SINGLE_PARAMS,
    )(a_hat.astype(jnp.bfloat16), x.astype(jnp.bfloat16),
      p["gcn1_w"].astype(jnp.bfloat16), p["gcn1_b"].reshape(1, -1),
      p["gcn2_w"].astype(jnp.bfloat16), p["gcn2_b"].reshape(1, -1),
      p["gcn3_w"].astype(jnp.bfloat16), p["gcn3_b"].reshape(1, -1))


# --------------- kernel 3: graph projection head (3 Linear + LN) ------------

def _graph_proj_kernel(x_ref, w1_ref, b1_ref, w2_ref, b2_ref, w3_ref, b3_ref,
                       g_ref, bb_ref, o_ref, *, eps):
    h = jnp.dot(x_ref[...].astype(jnp.bfloat16), w1_ref[...],
                preferred_element_type=jnp.float32) + b1_ref[...]
    h = jnp.maximum(h, 0.0)
    h = jnp.dot(h.astype(jnp.bfloat16), w2_ref[...],
                preferred_element_type=jnp.float32) + b2_ref[...]
    h = jnp.maximum(h, 0.0)
    y = jnp.dot(h.astype(jnp.bfloat16), w3_ref[...],
                preferred_element_type=jnp.float32) + b3_ref[...]
    mu = jnp.mean(y, axis=-1, keepdims=True)
    var = jnp.mean((y - mu) ** 2, axis=-1, keepdims=True)
    o_ref[...] = (y - mu) * jax.lax.rsqrt(var + eps) * g_ref[...] + bb_ref[...]


def graph_proj(x, p, eps=1e-5):
    m, ghc = x.shape
    nhid = p["gp1_w"].shape[1]
    nout = p["gp3_w"].shape[1]
    xp, tm, grid = _pad_rows(x, _ROW_TILE_CAP)
    out = pl.pallas_call(
        functools.partial(_graph_proj_kernel, eps=eps),
        grid=(grid,),
        in_specs=[
            pl.BlockSpec((tm, ghc), lambda i: (i, 0)),
            pl.BlockSpec((ghc, nhid), lambda i: (0, 0)),
            pl.BlockSpec((1, nhid), lambda i: (0, 0)),
            pl.BlockSpec((nhid, nhid), lambda i: (0, 0)),
            pl.BlockSpec((1, nhid), lambda i: (0, 0)),
            pl.BlockSpec((nhid, nout), lambda i: (0, 0)),
            pl.BlockSpec((1, nout), lambda i: (0, 0)),
            pl.BlockSpec((1, nout), lambda i: (0, 0)),
            pl.BlockSpec((1, nout), lambda i: (0, 0)),
        ],
        out_specs=pl.BlockSpec((tm, nout), lambda i: (i, 0)),
        out_shape=jax.ShapeDtypeStruct((xp.shape[0], nout), jnp.float32),
        compiler_params=_TILED_PARAMS,
    )(xp,
      p["gp1_w"].astype(jnp.bfloat16), p["gp1_b"].reshape(1, nhid),
      p["gp2_w"].astype(jnp.bfloat16), p["gp2_b"].reshape(1, nhid),
      p["gp3_w"].astype(jnp.bfloat16), p["gp3_b"].reshape(1, nout),
      p["gp_ln_g"].reshape(1, nout), p["gp_ln_b"].reshape(1, nout))
    return out[:m]


# ----- kernel 4a: tiny pre-kernel, hoisted query projection folded with Wk^T -----

def _q_fold_kernel(inter_ref, wq_ref, bq_ref, wkT_ref, qk_ref):
    # qk[h] = (interlingua @ Wq_h + bq_h) @ Wk_h^T  — identical for every batch element,
    # so it is computed exactly once per forward instead of once per attention grid step.
    num_heads = wq_ref.shape[0]
    inter = inter_ref[...].astype(jnp.bfloat16)                     # (L, D)
    for h in range(num_heads):                                      # static, runs once
        qh = jnp.dot(inter, wq_ref[h], preferred_element_type=jnp.float32) + bq_ref[h]
        qk_ref[h] = jnp.dot(qh.astype(jnp.bfloat16), wkT_ref[h],
                            preferred_element_type=jnp.float32)


def q_fold(interlingua, mha, num_heads=4):
    l_len, d = interlingua.shape
    return pl.pallas_call(
        _q_fold_kernel,
        out_shape=jax.ShapeDtypeStruct((num_heads, l_len, d), jnp.float32),
        compiler_params=_SINGLE_PARAMS,
    )(interlingua,
      mha["wq_h"].astype(jnp.bfloat16), mha["bq_h"],
      mha["wkT_h"].astype(jnp.bfloat16))


# ---- kernel 4b: fused 4-head cross attention + folded out proj + masked mean ----

def _cross_attn_kernel(qk_ref, kv_ref, keep_ref, wvo_ref, bvo_ref, attn_ref, mm_ref):
    num_heads, l_len, d = qk_ref.shape
    kv = kv_ref[0]                                  # (S, D) f32 key == value sequence
    keep = keep_ref[0]                              # (1, S) float, 1 = real token / node
    dh = d // num_heads
    scale = 1.0 / math.sqrt(dh)

    # masked mean of the raw key/value reps (query_update == 'cl'); exact divide, f32.
    num = jnp.dot(keep, kv, preferred_element_type=jnp.float32)      # (1, D)
    den = jnp.sum(keep, axis=-1, keepdims=True)                      # (1, 1)
    mm_ref[0] = num / den

    kv_b = kv.astype(jnp.bfloat16)
    qk = qk_ref[...].astype(jnp.bfloat16).reshape(num_heads * l_len, d)

    # scores: qk already folds (interlingua @ Wq + bq) @ Wk^T; the key bias bk drops out
    # because softmax over keys is shift-invariant.
    s = jnp.einsum('md,sd->ms', qk, kv_b,
                   preferred_element_type=jnp.float32) * scale        # (H*L, S) f32
    s = s + (keep - 1.0) * 1e30                                       # key padding mask, f32
    mx = jnp.max(s, axis=-1, keepdims=True)
    p = jnp.exp(s - mx)
    p = p / jnp.sum(p, axis=-1, keepdims=True)                        # exact divide

    # value + output projections folded: out = sum_h (p_h @ kv) @ (Wv_h @ Wo_h) + bvo.
    pv = jnp.dot(p.astype(jnp.bfloat16), kv_b,
                 preferred_element_type=jnp.float32)                  # (H*L, D)
    pv = pv.reshape(num_heads, l_len, d).astype(jnp.bfloat16)
    proj = jnp.einsum('hld,hdo->hlo', pv, wvo_ref[...],
                      preferred_element_type=jnp.float32)             # (H, L, D)
    attn_ref[0] = jnp.sum(proj, axis=0) + bvo_ref[...]


def cross_attention_and_masked_mean(qk, kv, keep, mha, num_heads=4):
    """qk: (H, L, D) hoisted query; kv: (G, S, D) stacked key/value sequences;
    keep: (G, S) float, 1 = real. G = 2*B (text batch + graph batch) so one launch serves
    both branches (and both v7x TensorCores via 'parallel')."""
    g_count, s_len, d = kv.shape
    l_len = qk.shape[1]
    h = num_heads
    keep3 = keep.reshape(g_count, 1, s_len)
    attn, mm = pl.pallas_call(
        _cross_attn_kernel,
        grid=(g_count,),
        in_specs=[
            pl.BlockSpec((h, l_len, d), lambda g: (0, 0, 0)),
            pl.BlockSpec((1, s_len, d), lambda g: (g, 0, 0)),
            pl.BlockSpec((1, 1, s_len), lambda g: (g, 0, 0)),
            pl.BlockSpec((h, d, d), lambda g: (0, 0, 0)),
            pl.BlockSpec((1, d), lambda g: (0, 0)),
        ],
        out_specs=[
            pl.BlockSpec((1, l_len, d), lambda g: (g, 0, 0)),
            pl.BlockSpec((1, 1, d), lambda g: (g, 0, 0)),
        ],
        out_shape=[
            jax.ShapeDtypeStruct((g_count, l_len, d), jnp.float32),
            jax.ShapeDtypeStruct((g_count, 1, d), jnp.float32),
        ],
        compiler_params=pltpu.CompilerParams(
            dimension_semantics=("parallel",), vmem_limit_bytes=_VMEM_LIMIT),
    )(qk, kv, keep3, mha["wvo_h"].astype(jnp.bfloat16), mha["bvo"])
    return attn, mm.reshape(g_count, d)


# ------- kernel 5: mean*exp(temp) + fc_sia (Linear+BN+Tanh) + L2 norm -------

def _head_kernel(x_ref, temp_ref, w_ref, b_ref, g_ref, bb_ref,
                 text_o_ref, mol_o_ref, *, eps_bn, eps_norm):
    batch = x_ref.shape[0] // 2
    scale = jnp.exp(temp_ref[...])                                   # (1, 1) f32
    x = jnp.mean(x_ref[...], axis=1) * scale                         # (2B, D)
    # one stacked (2B, D) @ (D, D) matmul for both branches
    y = jnp.dot(x.astype(jnp.bfloat16), w_ref[...],
                preferred_element_type=jnp.float32) + b_ref[...]

    def bn_tanh_norm(v):
        # BatchNorm1d training mode: per-branch batch statistics, biased variance
        mu = jnp.mean(v, axis=0, keepdims=True)
        var = jnp.mean((v - mu) ** 2, axis=0, keepdims=True)
        v = (v - mu) * jax.lax.rsqrt(var + eps_bn) * g_ref[...] + bb_ref[...]
        v = jnp.tanh(v)
        nrm = jnp.maximum(jnp.sqrt(jnp.sum(v * v, axis=1, keepdims=True)), eps_norm)
        return v / nrm                                               # exact divide

    text_o_ref[...] = bn_tanh_norm(y[:batch])
    mol_o_ref[...] = bn_tanh_norm(y[batch:])


def contrastive_heads(attn_all, batch, p):
    _, _, d = attn_all.shape
    fc = p["fc_sia"]
    fc_text, fc_mol = pl.pallas_call(
        functools.partial(_head_kernel, eps_bn=1e-5, eps_norm=1e-12),
        out_shape=[jax.ShapeDtypeStruct((batch, d), jnp.float32),
                   jax.ShapeDtypeStruct((batch, d), jnp.float32)],
        compiler_params=_SINGLE_PARAMS,
    )(attn_all, p["temp"].reshape(1, 1),
      fc["w"].astype(jnp.bfloat16), fc["b"].reshape(1, d),
      fc["bn_g"].reshape(1, d), fc["bn_b"].reshape(1, d))
    return fc_text, fc_mol


# ------------------------------ parameters ----------------------------------

def init_params(key, ninp, nhid, nout, ghc, nnf, interlingua_length, num_heads=4):
    keys = jax.random.split(key, 16)

    def w(i, shape, scale=0.1):
        return (scale * jax.random.normal(keys[i], shape)).astype(jnp.float32)

    zeros = lambda *s: jnp.zeros(s, jnp.float32)
    ones = lambda *s: jnp.ones(s, jnp.float32)

    interlingua = w(0, (interlingua_length, nout))
    interlingua = interlingua.at[0].set(0.0)            # nn.Embedding padding_idx=0

    dh = nout // num_heads

    def heads_in(wmat):      # (D, D) -> (H, D, dh): per-head output columns
        return jnp.transpose(wmat.reshape(nout, num_heads, dh), (1, 0, 2))

    wq, wk, wv, wo = (w(8, (nout, nout)), w(9, (nout, nout)),
                      w(10, (nout, nout)), w(11, (nout, nout)))
    bq, bk, bv, bo = zeros(nout), zeros(nout), zeros(nout), zeros(nout)
    del bk  # key bias has no effect on outputs (softmax shift invariance)

    wv_h = heads_in(wv)                                  # (H, D, dh)
    wo_h = wo.reshape(num_heads, dh, nout)               # (H, dh, D)

    params = {
        "temp": jnp.array([0.07], jnp.float32),
        "text_proj_w": w(1, (ninp, nout)), "text_proj_b": zeros(nout),
        "text_ln_g": ones(nout), "text_ln_b": zeros(nout),
        "gcn1_w": w(2, (nnf, ghc)), "gcn1_b": zeros(ghc),
        "gcn2_w": w(3, (ghc, ghc)), "gcn2_b": zeros(ghc),
        "gcn3_w": w(4, (ghc, ghc)), "gcn3_b": zeros(ghc),
        "gp1_w": w(5, (ghc, nhid)), "gp1_b": zeros(nhid),
        "gp2_w": w(6, (nhid, nhid)), "gp2_b": zeros(nhid),
        "gp3_w": w(7, (nhid, nout)), "gp3_b": zeros(nout),
        "gp_ln_g": ones(nout), "gp_ln_b": zeros(nout),
        "interlingua": interlingua,
        "mha": {
            # Folded / head-batched attention parameters (no in-kernel transpose/concat):
            #   wq_h  (H, D, dh)  query projection per head
            #   bq_h  (H, 1, dh)  query bias per head
            #   wkT_h (H, dh, D)  key projection transposed, folded into qk by the pre-kernel
            #   wvo_h (H, D, D)   Wv_h @ Wo_h — value+output projection, full-D contraction
            #   bvo   (1, D)      bv @ Wo + bo (softmax rows sum to 1)
            "wq_h": heads_in(wq),
            "bq_h": bq.reshape(num_heads, 1, dh),
            "wkT_h": jnp.transpose(heads_in(wk), (0, 2, 1)),
            "wvo_h": jnp.einsum('hdk,hko->hdo', wv_h, wo_h),
            "bvo": bv.reshape(1, nout) @ wo + bo.reshape(1, nout),
        },
        "fc_sia": {
            "w": w(12, (nout, nout)), "b": zeros(nout),
            "bn_g": ones(nout), "bn_b": zeros(nout),
        },
    }
    return params


# ------------------------------- forward -------------------------------------

def forward(params, token_hidden, text_mask, node_x, edge_index, node_batch_lens):
    """token_hidden: (B,S,ninp) BERT last_hidden_state stand-in; text_mask: (B,S) bool True=real;
    node_x: (N,nnf); edge_index: (2,E) [src;dst]; node_batch_lens: python list of nodes/graph."""
    B, S, ninp = token_hidden.shape
    nout = params["text_proj_w"].shape[1]

    # ---- text_proj_head: fused Linear + LayerNorm (row-tiled, padded ragged tail) ----
    token_reps = text_proj_layernorm(
        token_hidden.reshape(B * S, ninp),
        params["text_proj_w"], params["text_proj_b"],
        params["text_ln_g"], params["text_ln_b"]).reshape(B, S, nout)

    # ---- GCNConv x3 with symmetric normalization + self loops (dense A_hat) -
    N = node_x.shape[0]
    A = jnp.zeros((N, N), jnp.float32).at[edge_index[1], edge_index[0]].set(1.0)
    A = A + jnp.eye(N, dtype=jnp.float32)
    dinv = jax.lax.rsqrt(jnp.sum(A, axis=1))
    a_hat = A * dinv[:, None] * dinv[None, :]
    h = gcn3(a_hat, node_x, params)

    # ---- graph_proj_head: fused Linear/ReLU x2 + Linear + LayerNorm ---------
    node_reps = graph_proj(h, params)

    # ---- translate(): single scatter into a padded (B, max_len, D) buffer ---
    lens = np.asarray(node_batch_lens, dtype=np.int32)
    max_len = int(lens.max())
    batch_ids = np.repeat(np.arange(B, dtype=np.int32), lens)
    pos_ids = np.concatenate([np.arange(l, dtype=np.int32) for l in lens])
    node_reps_p = jnp.ones((B, max_len, nout), jnp.float32).at[batch_ids, pos_ids].set(node_reps)
    node_keep = jnp.asarray(np.arange(max_len)[None, :] < lens[:, None])   # True = real node

    # ---- stack text + graph sequences: one attention launch serves both -----
    s_pad = max(S, max_len)

    def pad_seq(x, value):
        pad = s_pad - x.shape[1]
        if pad == 0:
            return x
        return jnp.concatenate(
            [x, jnp.full((x.shape[0], pad) + x.shape[2:], value, x.dtype)], axis=1)

    kv_all = jnp.concatenate([pad_seq(token_reps, 0.0),
                              pad_seq(node_reps_p, 1.0)], axis=0)          # (2B, s_pad, D)
    keep_all = jnp.concatenate([pad_seq(text_mask.astype(jnp.float32), 0.0),
                                pad_seq(node_keep.astype(jnp.float32), 0.0)], axis=0)

    # ---- hoisted query projection (once per forward, not per grid step) -----
    qk = q_fold(params["interlingua"], params["mha"])                      # (H, L, D)

    # ---- fused 4-head attention + folded out proj + masked means ------------
    attn_all, mm_all = cross_attention_and_masked_mean(qk, kv_all, keep_all, params["mha"])

    token_reps2 = attn_all[:B]          # (B, L, D)
    atom_reps = attn_all[B:]            # (B, L, D)
    temp_text_x = mm_all[:B]            # (B, D)  masked mean (query_update == 'cl')
    temp_x = mm_all[B:]                 # (B, D)

    # ---- mean * exp(temp) + fc_sia (Linear+BN+Tanh) + L2 norm ---------------
    fc_text, fc_mol = contrastive_heads(attn_all, B, params)

    return fc_text, fc_mol, temp_text_x, temp_x, (token_reps2, atom_reps)


# --------------------------------- demo ---------------------------------------

if __name__ == "__main__":
    B, S = 2, 8
    # D chosen as a multiple of 128 so every output store is lane-dense (no masked vst);
    # arbitrary nout would need zero-padded weights + LN over the real dims (not done here).
    ninp = nhid = nout = ghc = 128
    nnf = 16                               # num_node_features
    interlingua_length = 8

    key = jax.random.PRNGKey(0)
    k_params, k_text, k_nodes = jax.random.split(key, 3)
    params = init_params(k_params, ninp, nhid, nout, ghc, nnf, interlingua_length)

    token_hidden = jax.random.normal(k_text, (B, S, ninp), jnp.float32)
    text_mask = jnp.array([[1, 1, 1, 1, 1, 1, 0, 0],
                           [1, 1, 1, 1, 0, 0, 0, 0]], dtype=bool)

    lens = [5, 3]                          # nodes per graph (N = 8 total)
    node_x = jax.random.normal(k_nodes, (sum(lens), nnf), jnp.float32)
    # bidirectional chain edges within each graph
    src = [0, 1, 1, 2, 2, 3, 3, 4, 5, 6, 6, 7]
    dst = [1, 0, 2, 1, 3, 2, 4, 3, 6, 5, 7, 6]
    edge_index = jnp.array([src, dst], jnp.int32)

    outs = forward(params, token_hidden, text_mask, node_x, edge_index, lens)
    outs = jax.block_until_ready(outs)
    print("KERNEL_OK")
</pallas_src>

<mosaic_0001>
module attributes {stable_mosaic.version = 11 : i64} {
  func.func @_proj_ln_kernel(%arg0: i32, %arg1: memref<16x128xf32, #tpu.memory_space<vmem>>, %arg2: memref<128x128xbf16, #tpu.memory_space<vmem>>, %arg3: memref<1x128xf32, #tpu.memory_space<vmem>>, %arg4: memref<1x128xf32, #tpu.memory_space<vmem>>, %arg5: memref<1x128xf32, #tpu.memory_space<vmem>>, %arg6: memref<16x128xf32, #tpu.memory_space<vmem>>) attributes {dimension_semantics = [#tpu.dimension_semantics<parallel>], iteration_bounds = array<i64: 1>, scalar_prefetch = 0 : i64, scratch_operands = 0 : i64, tpu.core_type = #tpu.core_type<tc>, window_params = [{transform_indices = @transform_0, window_bounds = array<i64: 16, 128>}, {pipeline_mode = #tpu.pipeline_mode<synchronous>, transform_indices = @transform_1, window_bounds = array<i64: 128, 128>}, {pipeline_mode = #tpu.pipeline_mode<synchronous>, transform_indices = @transform_2, window_bounds = array<i64: 1, 128>}, {pipeline_mode = #tpu.pipeline_mode<synchronous>, transform_indices = @transform_3, window_bounds = array<i64: 1, 128>}, {pipeline_mode = #tpu.pipeline_mode<synchronous>, transform_indices = @transform_4, window_bounds = array<i64: 1, 128>}, {transform_indices = @transform_5, window_bounds = array<i64: 16, 128>}]} {
    %c0 = arith.constant 0 : index
    %c0_0 = arith.constant 0 : index
    %0 = vector.load %arg1[%c0, %c0_0] : memref<16x128xf32, #tpu.memory_space<vmem>>, vector<16x128xf32>
    %1 = arith.truncf %0 : vector<16x128xf32> to vector<16x128xbf16>
    %c0_1 = arith.constant 0 : index
    %c0_2 = arith.constant 0 : index
    %2 = vector.load %arg2[%c0_1, %c0_2] : memref<128x128xbf16, #tpu.memory_space<vmem>>, vector<128x128xbf16>
    %cst = arith.constant dense<0.000000e+00> : vector<16x128xf32>
    %3 = tpu.matmul %1, %2, %cst {dimension_numbers = #tpu.dot_dimension_numbers<[1], [0], [0], [1], [0, 0, 1, 1], [], []>} : vector<16x128xbf16>, vector<128x128xbf16>, vector<16x128xf32> -> vector<16x128xf32>
    %c0_3 = arith.constant 0 : index
    %c0_4 = arith.constant 0 : index
    %4 = vector.load %arg3[%c0_3, %c0_4] : memref<1x128xf32, #tpu.memory_space<vmem>>, vector<1x128xf32>
    %5 = vector.broadcast %4 : vector<1x128xf32> to vector<16x128xf32>
    %6 = arith.addf %3, %5 : vector<16x128xf32>
    %cst_5 = arith.constant dense<0.000000e+00> : vector<16xf32>
    %7 = vector.multi_reduction <add>, %6, %cst_5 [1] : vector<16x128xf32> to vector<16xf32>
    %8 = vector.shape_cast %7 : vector<16xf32> to vector<16x1xf32>
    %cst_6 = arith.constant 1.280000e+02 : f32
    %9 = vector.broadcast %cst_6 : f32 to vector<16x1xf32>
    %10 = arith.divf %8, %9 : vector<16x1xf32>
    %11 = vector.broadcast %10 : vector<16x1xf32> to vector<16x128xf32>
    %12 = arith.subf %6, %11 : vector<16x128xf32>
    %13 = arith.mulf %12, %12 : vector<16x128xf32>
    %cst_7 = arith.constant dense<0.000000e+00> : vector<16xf32>
    %14 = vector.multi_reduction <add>, %13, %cst_7 [1] : vector<16x128xf32> to vector<16xf32>
    %15 = vector.shape_cast %14 : vector<16xf32> to vector<16x1xf32>
    %cst_8 = arith.constant 1.280000e+02 : f32
    %16 = vector.broadcast %cst_8 : f32 to vector<16x1xf32>
    %17 = arith.divf %15, %16 : vector<16x1xf32>
    %18 = vector.broadcast %10 : vector<16x1xf32> to vector<16x128xf32>
    %19 = arith.subf %6, %18 : vector<16x128xf32>
    %cst_9 = arith.constant 9.99999974E-6 : f32
    %20 = vector.broadcast %cst_9 : f32 to vector<16x1xf32>
    %21 = arith.addf %17, %20 : vector<16x1xf32>
    %22 = math.rsqrt %21 : vector<16x1xf32>
    %23 = vector.broadcast %22 : vector<16x1xf32> to vector<16x128xf32>
    %24 = arith.mulf %19, %23 : vector<16x128xf32>
    %c0_10 = arith.constant 0 : index
    %c0_11 = arith.constant 0 : index
    %25 = vector.load %arg4[%c0_10, %c0_11] : memref<1x128xf32, #tpu.memory_space<vmem>>, vector<1x128xf32>
    %26 = vector.broadcast %25 : vector<1x128xf32> to vector<16x128xf32>
    %27 = arith.mulf %24, %26 : vector<16x128xf32>
    %c0_12 = arith.constant 0 : index
    %c0_13 = arith.constant 0 : index
    %28 = vector.load %arg5[%c0_12, %c0_13] : memref<1x128xf32, #tpu.memory_space<vmem>>, vector<1x128xf32>
    %29 = vector.broadcast %28 : vector<1x128xf32> to vector<16x128xf32>
    %30 = arith.addf %27, %29 : vector<16x128xf32>
    %c0_14 = arith.constant 0 : index
    %c0_15 = arith.constant 0 : index
    %31 = vector.load %arg6[%c0_14, %c0_15] : memref<16x128xf32, #tpu.memory_space<vmem>>, vector<16x128xf32>
    tpu.vector_store %arg6[%c0_14, %c0_15], %30 {strides = array<i32>} : memref<16x128xf32, #tpu.memory_space<vmem>>, vector<16x128xf32>,
    return
  }
  func.func @transform_0(%arg0: i32) -> (i32, i32) {
    %c0_i32 = arith.constant 0 : i32
    %c0_i32_0 = arith.constant 0 : i32
    return %arg0, %c0_i32 : i32, i32
  }
  func.func @transform_1(%arg0: i32) -> (i32, i32) {
    %c0_i32 = arith.constant 0 : i32
    %c0_i32_0 = arith.constant 0 : i32
    %c0_i32_1 = arith.constant 0 : i32
    return %c0_i32, %c0_i32_0 : i32, i32
  }
  func.func @transform_2(%arg0: i32) -> (i32, i32) {
    %c0_i32 = arith.constant 0 : i32
    %c0_i32_0 = arith.constant 0 : i32
    %c0_i32_1 = arith.constant 0 : i32
    return %c0_i32, %c0_i32_0 : i32, i32
  }
  func.func @transform_3(%arg0: i32) -> (i32, i32) {
    %c0_i32 = arith.constant 0 : i32
    %c0_i32_0 = arith.constant 0 : i32
    %c0_i32_1 = arith.constant 0 : i32
    return %c0_i32, %c0_i32_0 : i32, i32
  }
  func.func @transform_4(%arg0: i32) -> (i32, i32) {
    %c0_i32 = arith.constant 0 : i32
    %c0_i32_0 = arith.constant 0 : i32
    %c0_i32_1 = arith.constant 0 : i32
    return %c0_i32, %c0_i32_0 : i32, i32
  }
  func.func @transform_5(%arg0: i32) -> (i32, i32) {
    %c0_i32 = arith.constant 0 : i32
    %c0_i32_0 = arith.constant 0 : i32
    return %arg0, %c0_i32 : i32, i32
  }
}

</mosaic_0001>

<llo_original>
// kernel: tpu_custom_call.1
$region0: #{tpu_custom_call.1}
  #allocation0 [shape = 'u32[]', space=smem, size = 0x4, offset = 0x4, fixed_abs, tag = 'smem constant byte address 0x4 - core index']
  #allocation1 [shape = 'u32[144,128]{1,0:T(1,128)}', space=vmem, size = 0x12000, scoped, tag = 'internal scratch']
  %s0 = inlined_call_operand.hbm [shape: f32[16,128], index: 0, kind: input, shape index: {}]
  %s1 = inlined_call_operand.hbm [shape: bf16[128,128], index: 1, kind: input, shape index: {}]
  %s2 = inlined_call_operand.vmem [shape: f32[1,128], index: 2, kind: input, shape index: {}]
  %s3 = inlined_call_operand.vmem [shape: f32[1,128], index: 3, kind: input, shape index: {}]
  %s4 = inlined_call_operand.vmem [shape: f32[1,128], index: 4, kind: input, shape index: {}]
  %s5 = inlined_call_operand.hbm [shape: f32[16,128], index: 5, kind: output, shape index: {}]
  %s6 = sld [smem:[#allocation0]]
  $region38: #{tpu_custom_call.1} parent=0
    _
  %s8 = ssub.s32 1, %s6
  %s9 = scalar_select 0, %s8, %s6
  $region1: #{tpu_custom_call.1} parent=0
    #allocation2 [shape = 'u8[8192]{0}', space=vmem, size = 0x2000, scoped, tag = 'input window, operand 0, single buffered']
    #allocation3 [shape = 's32[1]{0}', space=sflag, size = 0x4, scoped, tag = 'scoped memory for tpu_custom_call.1']
    #allocation4 [shape = 's32[1]{0}', space=sflag, size = 0x4, scoped, tag = 'scoped memory for tpu_custom_call.1']
    #allocation5 [shape = 'u8[32768]{0}', space=vmem, size = 0x8000, scoped, tag = 'input window, operand 1, single buffered']
    #allocation6 [shape = 's32[1]{0}', space=sflag, size = 0x4, scoped, tag = 'scoped memory for tpu_custom_call.1']
    #allocation7 [shape = 'u8[8192]{0}', space=vmem, size = 0x2000, scoped, tag = 'output window, operand 0, single buffered']
    %10 = vsyncpa [#allocation3], 0
    %11 = vsyncpa [#allocation6], 0
    %12 = vsyncpa [#allocation4], 0
    // Predicated region
    $region2: #{tpu_custom_call.1} parent=1 // pred_check
      _
    $region3: #{tpu_custom_call.1} parent=1 // pred_check_branch
      %14 = sbr.rel (0) target = $region5
    $region4: #{tpu_custom_call.1} parent=1 // pred_region
      %s16 = ssub.s32 256, 256
      %17 = vsyncadd [#allocation3], %s16
      %s18 = sshll.u32 [#allocation2], 4
      %s19 = int_to_ptr.vmem [resolvable:$true] %s18
      %24 = dma.hbm_to_vmem [thread:$0]  %s0, 256, %s19, [#allocation3], 128, 128, 8
    $region5: #{tpu_custom_call.1} parent=1 // pred_fallthru
      _
    // Predicated region
    $region6: #{tpu_custom_call.1} parent=1 // pred_check
      _
    $region7: #{tpu_custom_call.1} parent=1 // pred_check_branch
      %26 = sbr.rel (0) target = $region9
    $region8: #{tpu_custom_call.1} parent=1 // pred_region
      %s28 = ssub.s32 1024, 1024
      %29 = vsyncadd [#allocation6], %s28
      %s30 = sshll.u32 [#allocation5], 4
      %s31 = int_to_ptr.vmem [resolvable:$true] %s30
      %36 = dma.hbm_to_vmem [thread:$0]  %s1, 1024, %s31, [#allocation6], 64, 64, 4
    $region9: #{tpu_custom_call.1} parent=1 // pred_fallthru
      _
    // Predicated region
    $region10: #{tpu_custom_call.1} parent=1 // pred_check
      _
    $region11: #{tpu_custom_call.1} parent=1 // pred_check_branch
      %38 = sbr.rel (0) target = $region13
    $region12: #{tpu_custom_call.1} parent=1 // pred_region
      _
    $region13: #{tpu_custom_call.1} parent=1 // pred_fallthru
      _
    // Predicated region
    $region14: #{tpu_custom_call.1} parent=1 // pred_check
      _
    $region15: #{tpu_custom_call.1} parent=1 // pred_check_branch
      %40 = sbr.rel (0) target = $region17
    $region16: #{tpu_custom_call.1} parent=1 // pred_region
      _
    $region17: #{tpu_custom_call.1} parent=1 // pred_fallthru
      _
    // Predicated region
    $region18: #{tpu_custom_call.1} parent=1 // pred_check
      _
    $region19: #{tpu_custom_call.1} parent=1 // pred_check_branch
      %42 = sbr.rel (0) target = $region21
    $region20: #{tpu_custom_call.1} parent=1 // pred_region
      _
    $region21: #{tpu_custom_call.1} parent=1 // pred_fallthru
      _
    // Predicated region
    $region22: #{tpu_custom_call.1} parent=1 // pred_check
      _
    $region23: #{tpu_custom_call.1} parent=1 // pred_check_branch
      %44 = sbr.rel (0) target = $region25
    $region24: #{tpu_custom_call.1} parent=1 // pred_region
      %45 = dma.done [#allocation3], 256
    $region25: #{tpu_custom_call.1} parent=1 // pred_fallthru
      _
    // Predicated region
    $region26: #{tpu_custom_call.1} parent=1 // pred_check
      _
    $region27: #{tpu_custom_call.1} parent=1 // pred_check_branch
      %47 = sbr.rel (0) target = $region29
    $region28: #{tpu_custom_call.1} parent=1 // pred_region
      %48 = dma.done [#allocation6], 1024
    $region29: #{tpu_custom_call.1} parent=1 // pred_fallthru
      _
    %v50 = vld [vmem:[#allocation2] sm:$0xff]
    %v51 = vld [vmem:[#allocation2 + $0x8] sm:$0xff]
    %v52 = vpack.c.bf16 %v51, %v50
    %v53 = vld [vmem:[#allocation5] sm:$0xf]
    %v54 = vld [vmem:[#allocation5 + $0x4] sm:$0xf]
    %v55 = vld [vmem:[#allocation5 + $0x8] sm:$0xf]
    %v56 = vld [vmem:[#allocation5 + $0xc] sm:$0xf]
    %v57 = vld [vmem:[#allocation5 + $0x10] sm:$0xf]
    %v58 = vld [vmem:[#allocation5 + $0x14] sm:$0xf]
    %v59 = vld [vmem:[#allocation5 + $0x18] sm:$0xf]
    %v60 = vld [vmem:[#allocation5 + $0x1c] sm:$0xf]
    %v61 = vld [vmem:[#allocation5 + $0x20] sm:$0xf]
    %v62 = vld [vmem:[#allocation5 + $0x24] sm:$0xf]
    %v63 = vld [vmem:[#allocation5 + $0x28] sm:$0xf]
    %v64 = vld [vmem:[#allocation5 + $0x2c] sm:$0xf]
    %v65 = vld [vmem:[#allocation5 + $0x30] sm:$0xf]
    %v66 = vld [vmem:[#allocation5 + $0x34] sm:$0xf]
    %v67 = vld [vmem:[#allocation5 + $0x38] sm:$0xf]
    %v68 = vld [vmem:[#allocation5 + $0x3c] sm:$0xf]
    %v69 = vld [vmem:[%s2] sm:$0x1]
    %v71 = vlaneseq
    %v72 = vshrl.u32 %v71, 7
    %v73 = vsub.s32 0, %v72
    %v74 = vrot.slane %v69, %v73
    %v92 = vunpack.c.l.b16 %v53
    %v93 = vunpack.c.l.b16 %v54
    %v94 = vunpack.c.l.b16 %v55
    %v95 = vunpack.c.l.b16 %v56
    %v96 = vunpack.c.l.b16 %v57
    %v97 = vunpack.c.l.b16 %v58
    %v98 = vunpack.c.l.b16 %v59
    %v99 = vunpack.c.l.b16 %v60
    %v100 = vunpack.c.l.b16 %v61
    %v101 = vunpack.c.l.b16 %v62
    %v102 = vunpack.c.l.b16 %v63
    %v103 = vunpack.c.l.b16 %v64
    %v104 = vunpack.c.l.b16 %v65
    %v105 = vunpack.c.l.b16 %v66
    %v106 = vunpack.c.l.b16 %v67
    %v107 = vunpack.c.l.b16 %v68
    %v108 = vpack.c.b16 %v93, %v92
    %v109 = vpack.c.b16 %v95, %v94
    %v110 = vpack.c.b16 %v97, %v96
    %v111 = vpack.c.b16 %v99, %v98
    %v112 = vpack.c.b16 %v101, %v100
    %v113 = vpack.c.b16 %v103, %v102
    %v114 = vpack.c.b16 %v105, %v104
    %v115 = vpack.c.b16 %v107, %v106
    %124 = vmatprep.subr.bf16.mxu0 0
    %125 = vmatpush1.bf16.msra.mxu0 %v108
    %126 = vmatprep.subr.bf16.mxu0 0
    %127 = vmatpush1.bf16.msra.mxu0 %v109
    %128 = vmatprep.subr.bf16.mxu0 0
    %129 = vmatpush1.bf16.msra.mxu0 %v110
    %130 = vmatprep.subr.bf16.mxu0 0
    %131 = vmatpush1.bf16.msra.mxu0 %v111
    %132 = vmatprep.subr.bf16.mxu0 0
    %133 = vmatpush1.bf16.msra.mxu0 %v112
    %134 = vmatprep.subr.bf16.mxu0 0
    %135 = vmatpush1.bf16.msra.mxu0 %v113
    %136 = vmatprep.subr.bf16.mxu0 0
    %137 = vmatpush1.bf16.msra.mxu0 %v114
    %138 = vmatprep.subr.bf16.mxu0 0
    %139 = vmatpush1.bf16.msra.mxu0 %v115
    %140 = vmatprep.subr.bf16.mxu0 0
    %141 = vmatpush1.bf16.msra.mxu0 0
    %142 = vmatprep.subr.bf16.mxu0 0
    %143 = vmatpush1.bf16.msra.mxu0 0
    %144 = vmatprep.subr.bf16.mxu0 0
    %145 = vmatpush1.bf16.msra.mxu0 0
    %146 = vmatprep.subr.bf16.mxu0 0
    %147 = vmatpush1.bf16.msra.mxu0 0
    %148 = vmatprep.subr.bf16.mxu0 0
    %149 = vmatpush1.bf16.msra.mxu0 0
    %150 = vmatprep.subr.bf16.mxu0 0
    %151 = vmatpush1.bf16.msra.mxu0 0
    %152 = vmatprep.subr.bf16.mxu0 0
    %153 = vmatpush1.bf16.msra.mxu0 0
    %154 = vmatprep.subr.bf16.mxu0 0
    %155 = vmatpush1.bf16.msra.mxu0 0
    %156 = vmatprep.mubr.bf16.mxu0 0
    %157 = vmatmul.mubr.bf16.gmra.mrb[0].mxu0 %v52
    %v158 = vpop.f32.mrb[0].mxu0
    %v159 = vadd.f32 %v74, %v158
    %v160 = vpop.f32.mrb[0].mxu0
    %v161 = vpop.f32.mrb[0].mxu0
    %v162 = vadd.f32 %v74, %v161
    %v163 = vpop.f32.mrb[0].mxu0
    %164 = vdwg.mxu0
    %165 = vadd.xlane.f32.xlu0 %v159
    %v166 = vpop.xlane.xlu0 %165
    %167 = vadd.xlane.f32.xlu0 %v162
    %v168 = vpop.xlane.xlu0 %167
    %v169 = vrcp.pop 128.0
    %v170 = vmul.f32 %v166, %v169
    %v171 = vmul.f32 %v168, %v169
    %v172 = vsub.f32 %v159, %v170
    %v173 = vsub.f32 %v162, %v171
    %v174 = vmul.f32 %v172, %v172
    %v175 = vmul.f32 %v173, %v173
    %176 = vadd.xlane.f32.xlu0 %v174
    %v177 = vpop.xlane.xlu0 %176
    %178 = vadd.xlane.f32.xlu0 %v175
    %v179 = vpop.xlane.xlu0 %178
    %v180 = vmul.f32 %v177, %v169
    %v181 = vmul.f32 %v179, %v169
    %v182 = vadd.f32 %v180, 1e-05
    %v183 = vadd.f32 %v181, 1e-05
    %v184 = vrsqrt.pop %v182
    %v185 = vrsqrt.pop %v183
    %v186 = vmul.f32 %v172, %v184
    %v187 = vmul.f32 %v173, %v185
    %v188 = vld [vmem:[%s3] sm:$0x1]
    %v190 = vlaneseq
    %v191 = vshrl.u32 %v190, 7
    %v192 = vsub.s32 0, %v191
    %v193 = vrot.slane %v188, %v192
    %v195 = vmul.f32 %v186, %v193
    %v196 = vmul.f32 %v187, %v193
    %v197 = vld [vmem:[%s4] sm:$0x1]
    %v199 = vlaneseq
    %v200 = vshrl.u32 %v199, 7
    %v201 = vsub.s32 0, %v200
    %v202 = vrot.slane %v197, %v201
    %v204 = vadd.f32 %v195, %v202
    %v205 = vadd.f32 %v196, %v202
    %206 = vst [vmem:[#allocation7] sm:$0xff] %v204
    %207 = vst [vmem:[#allocation7 + $0x8] sm:$0xff] %v205
    // Predicated region
    $region30: #{tpu_custom_call.1} parent=1 // pred_check
      _
    $region31: #{tpu_custom_call.1} parent=1 // pred_check_branch
      %209 = sbr.rel (0) target = $region33
    $region32: #{tpu_custom_call.1} parent=1 // pred_region
      %s211 = ssub.s32 256, 256
      %212 = vsyncadd [#allocation4], %s211
      %s213 = sshll.u32 [#allocation7], 4
      %s214 = int_to_ptr.vmem [resolvable:$true] %s213
      %219 = dma.vmem_to_hbm [thread:$0]  %s214, 256, %s5, [#allocation4], 128, 128, 8
    $region33: #{tpu_custom_call.1} parent=1 // pred_fallthru
      _
    // Predicated region
    $region34: #{tpu_custom_call.1} parent=1 // pred_check
      _
    $region35: #{tpu_custom_call.1} parent=1 // pred_check_branch
      %221 = sbr.rel (0) target = $region37
    $region36: #{tpu_custom_call.1} parent=1 // pred_region
      %222 = dma.done [#allocation4], 256
    $region37: #{tpu_custom_call.1} parent=1 // pred_fallthru
      _
    %223 = vsyncpa [#allocation3], 1
    %224 = vsyncpa [#allocation6], 1
    %225 = vsyncpa [#allocation4], 1

</llo_original>
